<compile_context>
chip_gen: v7x
topology: tpu7x:2x2x1
jax: 0.10.0
libtpu: 0.0.40
codegen_flags: <defaults>
</compile_context>

<pallas_src>
import functools

import jax
import jax.numpy as jnp
from jax import lax
from jax.experimental import pallas as pl
from jax.experimental.pallas import tpu as pltpu


def _round_up(x, m):
    return ((x + m - 1) // m) * m


def _conv_embed_kernel(x_ref, w_ref, p_ref, o_ref, *, cout: int,
                       use_norm: bool, eps: float):
    # x_ref: (tm, K)      im2col rows (compute dtype); K = Cin*kh*kw, unpadded
    # w_ref: (K, N_pad)   projection weights (compute dtype), lane-dense N
    # p_ref: (8, N_pad)   f32 params; row0=bias, row1=gamma, row2=beta,
    #                     row3=lane-validity mask (1.0 true channel, 0.0 pad)
    # o_ref: (tm, N_pad)  output tile (lane-dense, N_pad % 128 == 0)
    acc = jnp.dot(x_ref[...], w_ref[...], preferred_element_type=jnp.float32)
    acc = acc + p_ref[0:1, :]                       # bias (padded lanes are 0)
    if use_norm:
        n_pad = acc.shape[-1]
        inv_cout = 1.0 / cout                       # compile-time constant
        if n_pad == cout:
            mean = jnp.sum(acc, axis=-1, keepdims=True) * inv_cout
            centered = acc - mean
        else:
            # Stats over the true `cout` channels only; the precomputed mask
            # row keeps the zero padding out of mean/variance without
            # rebuilding an iota+compare every grid step.
            mask = p_ref[3:4, :]
            mean = jnp.sum(acc * mask, axis=-1, keepdims=True) * inv_cout
            centered = (acc - mean) * mask
        var = jnp.sum(centered * centered, axis=-1, keepdims=True) * inv_cout
        # Note: rows beyond M in the last partial block may hold stale data;
        # they are never stored (masked writeback), and eps>0 keeps all-zero
        # rows finite, so this is safe.
        acc = centered * lax.rsqrt(var + eps) * p_ref[1:2, :] + p_ref[2:3, :]
    o_ref[...] = acc.astype(o_ref.dtype)


def conv_embed(x, w, b, gamma=None, beta=None, *, stride=4, padding=2,
               eps=1e-5, tm=None, compute_dtype=jnp.bfloat16, out_dtype=None,
               output_layout="nchw"):
    """Forward pass of ConvEmbed.

    x: (B, Cin, H, W)  NCHW
    w: (Cout, Cin, kh, kw)  PyTorch Conv2d weight layout
    b: (Cout,)
    gamma/beta: (Cout,) LayerNorm params, or None to skip the norm.
    output_layout: "nchw" (module semantics, (B, Cout, Ho, Wo)) or
                   "blc"  ((B, Ho*Wo, Cout) — the 'b (h w) c' tensor the next
                           CvT block consumes, skipping the NCHW round trip).
    """
    B, Cin, H, W = x.shape
    Cout, _, kh, kw = w.shape
    use_norm = gamma is not None
    out_dtype = compute_dtype if out_dtype is None else out_dtype

    Ho = (H + 2 * padding - kh) // stride + 1
    Wo = (W + 2 * padding - kw) // stride + 1
    M = B * Ho * Wo
    K = Cin * kh * kw
    N_pad = _round_up(Cout, 128)        # lane-dense output (unmasked vst)

    cbytes = jnp.dtype(compute_dtype).itemsize
    obytes = jnp.dtype(out_dtype).itemsize

    # ---- VMEM-aware row-tile selection + explicit vmem limit --------------
    try:
        vmem_cap = int(pltpu.get_tpu_info().vmem_capacity_bytes)
    except Exception:  # pragma: no cover - fallback if query unavailable
        vmem_cap = 64 << 20             # conservative (v7x per-core VMEM)
    vmem_limit = int(min(vmem_cap // 2, 64 << 20))
    if tm is None:
        if M <= 256:
            tm = M                      # single block via full-dim exception
        else:
            budget = (vmem_limit * 3) // 4
            # grid-invariant weight/params still reserve double buffers; count
            # them so later CvT stages (K up to ~3.5K) don't overshoot on v7x.
            fixed = 2 * K * N_pad * cbytes + 2 * 8 * N_pad * 4
            per_row = (2 * K * cbytes           # LHS double buffer
                       + 2 * N_pad * obytes     # output double buffer
                       + N_pad * 4)             # f32 intermediate headroom
            tm = max(128, min(2048, ((budget - fixed) // per_row) // 128 * 128))
            # Keep >= 2 grid steps so both v7x TensorCores get a tile.
            tm = min(tm, max(128, _round_up(pl.cdiv(M, 2), 128)))

    # ---- im2col glue: kh*kw strided slices + stack (no gather, no pad) ----
    x_c = x.astype(compute_dtype)
    x_nhwc = jnp.transpose(x_c, (0, 2, 3, 1))                     # (B,H,W,Cin)
    x_hpad = jnp.pad(x_nhwc, ((0, 0), (padding, padding),
                              (padding, padding), (0, 0)))
    h_span = stride * (Ho - 1) + 1
    w_span = stride * (Wo - 1) + 1
    slices = [
        lax.slice(x_hpad, (0, ih, iw, 0),
                  (B, ih + h_span, iw + w_span, Cin),
                  (1, stride, stride, 1))                         # (B,Ho,Wo,Cin)
        for ih in range(kh) for iw in range(kw)
    ]
    # (B, Ho, Wo, kh*kw, Cin) -> (M, K); K ordered (kh, kw, Cin).
    patches = jnp.stack(slices, axis=3).reshape(M, K)

    # Weight reordered to the same K ordering: (Cout,Cin,kh,kw)->(kh,kw,Cin,Cout).
    w_mat = jnp.transpose(w, (2, 3, 1, 0)).reshape(K, Cout).astype(compute_dtype)
    if N_pad != Cout:
        w_mat = jnp.pad(w_mat, ((0, 0), (0, N_pad - Cout)))

    # bias / gamma / beta / lane-mask fused into one (8, N_pad) f32 block.
    params = jnp.zeros((8, N_pad), jnp.float32)
    params = params.at[0, :Cout].set(b.astype(jnp.float32))
    if use_norm:
        params = params.at[1, :Cout].set(gamma.astype(jnp.float32))
        params = params.at[2, :Cout].set(beta.astype(jnp.float32))
        params = params.at[3, :Cout].set(1.0)

    kernel = functools.partial(_conv_embed_kernel, cout=Cout,
                               use_norm=use_norm, eps=eps)

    out2d = pl.pallas_call(
        kernel,
        out_shape=jax.ShapeDtypeStruct((M, N_pad), out_dtype),
        grid_spec=pltpu.PrefetchScalarGridSpec(
            num_scalar_prefetch=0,
            grid=(pl.cdiv(M, tm),),
            in_specs=[
                pl.BlockSpec((tm, K), lambda i: (i, 0)),       # patch rows
                pl.BlockSpec((K, N_pad), lambda i: (0, 0)),    # weights (invariant)
                pl.BlockSpec((8, N_pad), lambda i: (0, 0)),    # fused params
            ],
            out_specs=pl.BlockSpec((tm, N_pad), lambda i: (i, 0)),
        ),
        compiler_params=pltpu.CompilerParams(
            dimension_semantics=("parallel",),
            vmem_limit_bytes=vmem_limit),
    )(patches, w_mat, params)

    if N_pad != Cout:
        out2d = out2d[:, :Cout]
    if output_layout == "blc":
        return out2d.reshape(B, Ho * Wo, Cout)                 # 'b (h w) c'
    out = out2d.reshape(B, Ho, Wo, Cout)
    return jnp.transpose(out, (0, 3, 1, 2))                    # NCHW


def _reference(x, w, b, gamma, beta, *, stride, padding, eps=1e-5):
    y = lax.conv_general_dilated(
        x, w, window_strides=(stride, stride),
        padding=[(padding, padding), (padding, padding)],
        dimension_numbers=("NCHW", "OIHW", "NCHW"))
    y = y + b[None, :, None, None]
    B, C, H, W = y.shape
    t = jnp.transpose(y, (0, 2, 3, 1)).reshape(B, H * W, C)    # b (h w) c
    if gamma is not None:
        mu = jnp.mean(t, axis=-1, keepdims=True)
        var = jnp.mean(jnp.square(t - mu), axis=-1, keepdims=True)
        t = (t - mu) * lax.rsqrt(var + eps) * gamma + beta
    return jnp.transpose(t.reshape(B, H, W, C), (0, 3, 1, 2))


if __name__ == "__main__":
    key = jax.random.PRNGKey(0)
    k_x, k_w, k_b, k_g, k_be = jax.random.split(key, 5)

    # ConvEmbed defaults: patch_size=7, in_chans=3, embed_dim=64, stride=4, padding=2
    B, Cin, H, W = 2, 3, 16, 16
    Cout, kh, kw = 64, 7, 7
    stride, padding = 4, 2

    x = jax.random.normal(k_x, (B, Cin, H, W), jnp.float32)
    w = 0.05 * jax.random.normal(k_w, (Cout, Cin, kh, kw), jnp.float32)
    b = 0.1 * jax.random.normal(k_b, (Cout,), jnp.float32)
    gamma = 1.0 + 0.05 * jax.random.normal(k_g, (Cout,), jnp.float32)
    beta = 0.05 * jax.random.normal(k_be, (Cout,), jnp.float32)

    ref = _reference(x, w, b, gamma, beta, stride=stride, padding=padding)

    # Strict-accuracy path (f32 streams + f32 writeback): tight match.
    out_f32 = jax.block_until_ready(
        conv_embed(x, w, b, gamma, beta, stride=stride, padding=padding,
                   compute_dtype=jnp.float32))
    assert out_f32.shape == (B, Cout, 4, 4), out_f32.shape
    assert jnp.allclose(out_f32, ref, atol=1e-4, rtol=1e-4), float(
        jnp.max(jnp.abs(out_f32 - ref)))

    # Default perf path (bf16 streams + bf16 writeback, f32 accum + LayerNorm).
    out_bf16 = jax.block_until_ready(
        conv_embed(x, w, b, gamma, beta, stride=stride, padding=padding))
    assert out_bf16.shape == (B, Cout, 4, 4), out_bf16.shape
    assert out_bf16.dtype == jnp.bfloat16, out_bf16.dtype
    assert jnp.allclose(out_bf16.astype(jnp.float32), ref, atol=5e-2, rtol=5e-2), \
        float(jnp.max(jnp.abs(out_bf16.astype(jnp.float32) - ref)))

    # norm_layer=None default path.
    ref_nonorm = _reference(x, w, b, None, None, stride=stride, padding=padding)
    out_nonorm = jax.block_until_ready(
        conv_embed(x, w, b, None, None, stride=stride, padding=padding,
                   compute_dtype=jnp.float32))
    assert jnp.allclose(out_nonorm, ref_nonorm, atol=1e-4, rtol=1e-4)

    # Fused-consumer layout: 'b (h w) c' straight out of the kernel.
    out_blc = jax.block_until_ready(
        conv_embed(x, w, b, gamma, beta, stride=stride, padding=padding,
                   compute_dtype=jnp.float32, output_layout="blc"))
    ref_blc = jnp.transpose(ref, (0, 2, 3, 1)).reshape(B, 16, Cout)
    assert out_blc.shape == (B, 16, Cout), out_blc.shape
    assert jnp.allclose(out_blc, ref_blc, atol=1e-4, rtol=1e-4)

    print("KERNEL_OK")
</pallas_src>

<mosaic_0001>
module attributes {stable_mosaic.version = 11 : i64} {
  func.func @_conv_embed_kernel(%arg0: i32, %arg1: memref<32x147xf32, #tpu.memory_space<vmem>>, %arg2: memref<147x128xf32, #tpu.memory_space<vmem>>, %arg3: memref<8x128xf32, #tpu.memory_space<vmem>>, %arg4: memref<32x128xf32, #tpu.memory_space<vmem>>) attributes {dimension_semantics = [#tpu.dimension_semantics<parallel>], iteration_bounds = array<i64: 1>, scalar_prefetch = 0 : i64, scratch_operands = 0 : i64, tpu.core_type = #tpu.core_type<tc>, window_params = [{transform_indices = @transform_0, window_bounds = array<i64: 32, 147>}, {pipeline_mode = #tpu.pipeline_mode<synchronous>, transform_indices = @transform_1, window_bounds = array<i64: 147, 128>}, {pipeline_mode = #tpu.pipeline_mode<synchronous>, transform_indices = @transform_2, window_bounds = array<i64: 8, 128>}, {transform_indices = @transform_3, window_bounds = array<i64: 32, 128>}]} {
    %c0 = arith.constant 0 : index
    %c0_0 = arith.constant 0 : index
    %0 = vector.load %arg1[%c0, %c0_0] : memref<32x147xf32, #tpu.memory_space<vmem>>, vector<32x147xf32>
    %c0_1 = arith.constant 0 : index
    %c0_2 = arith.constant 0 : index
    %1 = vector.load %arg2[%c0_1, %c0_2] : memref<147x128xf32, #tpu.memory_space<vmem>>, vector<147x128xf32>
    %cst = arith.constant dense<0.000000e+00> : vector<32x128xf32>
    %2 = tpu.matmul %0, %1, %cst {dimension_numbers = #tpu.dot_dimension_numbers<[1], [0], [0], [1], [0, 0, 1, 1], [], []>} : vector<32x147xf32>, vector<147x128xf32>, vector<32x128xf32> -> vector<32x128xf32>
    %c0_3 = arith.constant 0 : index
    %c0_4 = arith.constant 0 : index
    %3 = vector.load %arg3[%c0_3, %c0_4] : memref<8x128xf32, #tpu.memory_space<vmem>>, vector<1x128xf32>
    %4 = vector.broadcast %3 : vector<1x128xf32> to vector<32x128xf32>
    %5 = arith.addf %2, %4 : vector<32x128xf32>
    %c3 = arith.constant 3 : index
    %c0_5 = arith.constant 0 : index
    %6 = vector.load %arg3[%c3, %c0_5] : memref<8x128xf32, #tpu.memory_space<vmem>>, vector<1x128xf32>
    %7 = vector.broadcast %6 : vector<1x128xf32> to vector<32x128xf32>
    %8 = arith.mulf %5, %7 : vector<32x128xf32>
    %cst_6 = arith.constant dense<0.000000e+00> : vector<32xf32>
    %9 = vector.multi_reduction <add>, %8, %cst_6 [1] : vector<32x128xf32> to vector<32xf32>
    %10 = vector.shape_cast %9 : vector<32xf32> to vector<32x1xf32>
    %cst_7 = arith.constant 1.562500e-02 : f32
    %11 = vector.broadcast %cst_7 : f32 to vector<32x1xf32>
    %12 = arith.mulf %10, %11 : vector<32x1xf32>
    %13 = vector.broadcast %12 : vector<32x1xf32> to vector<32x128xf32>
    %14 = arith.subf %5, %13 : vector<32x128xf32>
    %15 = vector.broadcast %6 : vector<1x128xf32> to vector<32x128xf32>
    %16 = arith.mulf %14, %15 : vector<32x128xf32>
    %17 = arith.mulf %16, %16 : vector<32x128xf32>
    %cst_8 = arith.constant dense<0.000000e+00> : vector<32xf32>
    %18 = vector.multi_reduction <add>, %17, %cst_8 [1] : vector<32x128xf32> to vector<32xf32>
    %19 = vector.shape_cast %18 : vector<32xf32> to vector<32x1xf32>
    %cst_9 = arith.constant 1.562500e-02 : f32
    %20 = vector.broadcast %cst_9 : f32 to vector<32x1xf32>
    %21 = arith.mulf %19, %20 : vector<32x1xf32>
    %cst_10 = arith.constant 9.99999974E-6 : f32
    %22 = vector.broadcast %cst_10 : f32 to vector<32x1xf32>
    %23 = arith.addf %21, %22 : vector<32x1xf32>
    %24 = math.rsqrt %23 : vector<32x1xf32>
    %25 = vector.broadcast %24 : vector<32x1xf32> to vector<32x128xf32>
    %26 = arith.mulf %16, %25 : vector<32x128xf32>
    %c1 = arith.constant 1 : index
    %c0_11 = arith.constant 0 : index
    %27 = vector.load %arg3[%c1, %c0_11] : memref<8x128xf32, #tpu.memory_space<vmem>>, vector<1x128xf32>
    %28 = vector.broadcast %27 : vector<1x128xf32> to vector<32x128xf32>
    %29 = arith.mulf %26, %28 : vector<32x128xf32>
    %c2 = arith.constant 2 : index
    %c0_12 = arith.constant 0 : index
    %30 = vector.load %arg3[%c2, %c0_12] : memref<8x128xf32, #tpu.memory_space<vmem>>, vector<1x128xf32>
    %31 = vector.broadcast %30 : vector<1x128xf32> to vector<32x128xf32>
    %32 = arith.addf %29, %31 : vector<32x128xf32>
    %c0_13 = arith.constant 0 : index
    %c0_14 = arith.constant 0 : index
    %33 = vector.load %arg4[%c0_13, %c0_14] : memref<32x128xf32, #tpu.memory_space<vmem>>, vector<32x128xf32>
    tpu.vector_store %arg4[%c0_13, %c0_14], %32 {strides = array<i32>} : memref<32x128xf32, #tpu.memory_space<vmem>>, vector<32x128xf32>,
    return
  }
  func.func @transform_0(%arg0: i32) -> (i32, i32) {
    %c0_i32 = arith.constant 0 : i32
    %c0_i32_0 = arith.constant 0 : i32
    return %arg0, %c0_i32 : i32, i32
  }
  func.func @transform_1(%arg0: i32) -> (i32, i32) {
    %c0_i32 = arith.constant 0 : i32
    %c0_i32_0 = arith.constant 0 : i32
    %c0_i32_1 = arith.constant 0 : i32
    return %c0_i32, %c0_i32_0 : i32, i32
  }
  func.func @transform_2(%arg0: i32) -> (i32, i32) {
    %c0_i32 = arith.constant 0 : i32
    %c0_i32_0 = arith.constant 0 : i32
    %c0_i32_1 = arith.constant 0 : i32
    return %c0_i32, %c0_i32_0 : i32, i32
  }
  func.func @transform_3(%arg0: i32) -> (i32, i32) {
    %c0_i32 = arith.constant 0 : i32
    %c0_i32_0 = arith.constant 0 : i32
    return %arg0, %c0_i32 : i32, i32
  }
}

</mosaic_0001>

<llo_original>
// kernel: tpu_custom_call.1
$region0: #{tpu_custom_call.1}
  #allocation0 [shape = 'u32[]', space=smem, size = 0x4, offset = 0x4, fixed_abs, tag = 'smem constant byte address 0x4 - core index']
  #allocation1 [shape = 'u32[144,128]{1,0:T(1,128)}', space=vmem, size = 0x12000, scoped, tag = 'internal scratch']
  %s0 = inlined_call_operand.hbm [shape: f32[32,147], index: 0, kind: input, shape index: {}]
  %s1 = inlined_call_operand.hbm [shape: f32[147,128], index: 1, kind: input, shape index: {}]
  %s2 = inlined_call_operand.hbm [shape: f32[8,128], index: 2, kind: input, shape index: {}]
  %s3 = inlined_call_operand.hbm [shape: f32[32,128], index: 3, kind: output, shape index: {}]
  %s4 = sld [smem:[#allocation0]]
  $region34: #{tpu_custom_call.1} parent=0
    _
  %s6 = ssub.s32 1, %s4
  %s7 = scalar_select 0, %s6, %s4
  $region1: #{tpu_custom_call.1} parent=0
    #allocation2 [shape = 'u8[32768]{0}', space=vmem, size = 0x8000, scoped, tag = 'input window, operand 0, single buffered']
    #allocation3 [shape = 's32[1]{0}', space=sflag, size = 0x4, scoped, tag = 'scoped memory for tpu_custom_call.1']
    #allocation4 [shape = 's32[1]{0}', space=sflag, size = 0x4, scoped, tag = 'scoped memory for tpu_custom_call.1']
    #allocation5 [shape = 'u8[77824]{0}', space=vmem, size = 0x13000, scoped, tag = 'input window, operand 1, single buffered']
    #allocation6 [shape = 's32[1]{0}', space=sflag, size = 0x4, scoped, tag = 'scoped memory for tpu_custom_call.1']
    #allocation7 [shape = 'u8[4096]{0}', space=vmem, size = 0x1000, scoped, tag = 'input window, operand 2, single buffered']
    #allocation8 [shape = 'u8[16384]{0}', space=vmem, size = 0x4000, scoped, tag = 'output window, operand 0, single buffered']
    %8 = vsyncpa [#allocation3], 0
    %9 = vsyncpa [#allocation6], 0
    %10 = vsyncpa [#allocation4], 0
    // Predicated region
    $region2: #{tpu_custom_call.1} parent=1 // pred_check
      _
    $region3: #{tpu_custom_call.1} parent=1 // pred_check_branch
      %12 = sbr.rel (0) target = $region5
    $region4: #{tpu_custom_call.1} parent=1 // pred_region
      %s14 = ssub.s32 1024, 1024
      %15 = vsyncadd [#allocation3], %s14
      %s16 = sshll.u32 [#allocation2], 4
      %s17 = int_to_ptr.vmem [resolvable:$true] %s16
      %22 = dma.hbm_to_vmem [thread:$0]  %s0, 1024, %s17, [#allocation3], 256, 256, 16
    $region5: #{tpu_custom_call.1} parent=1 // pred_fallthru
      _
    // Predicated region
    $region6: #{tpu_custom_call.1} parent=1 // pred_check
      _
    $region7: #{tpu_custom_call.1} parent=1 // pred_check_branch
      %24 = sbr.rel (0) target = $region9
    $region8: #{tpu_custom_call.1} parent=1 // pred_region
      %s26 = ssub.s32 2432, 2432
      %27 = vsyncadd [#allocation6], %s26
      %s28 = sshll.u32 [#allocation5], 4
      %s29 = int_to_ptr.vmem [resolvable:$true] %s28
      %34 = dma.hbm_to_vmem [thread:$0]  %s1, 2432, %s29, [#allocation6], 128, 128, 8
    $region9: #{tpu_custom_call.1} parent=1 // pred_fallthru
      _
    // Predicated region
    $region10: #{tpu_custom_call.1} parent=1 // pred_check
      _
    $region11: #{tpu_custom_call.1} parent=1 // pred_check_branch
      %36 = sbr.rel (0) target = $region13
    $region12: #{tpu_custom_call.1} parent=1 // pred_region
      %s38 = ssub.s32 128, 128
      %39 = vsyncadd [#allocation6], %s38
      %s41 = sshll.u32 [#allocation7], 4
      %s42 = int_to_ptr.vmem [resolvable:$true] %s41
      %44 = dma.hbm_to_vmem [thread:$0]  %s2, 128, %s42, [#allocation6]
    $region13: #{tpu_custom_call.1} parent=1 // pred_fallthru
      _
    // Predicated region
    $region14: #{tpu_custom_call.1} parent=1 // pred_check
      _
    $region15: #{tpu_custom_call.1} parent=1 // pred_check_branch
      %46 = sbr.rel (0) target = $region17
    $region16: #{tpu_custom_call.1} parent=1 // pred_region
      %47 = dma.done [#allocation3], 1024
    $region17: #{tpu_custom_call.1} parent=1 // pred_fallthru
      _
    // Predicated region
    $region18: #{tpu_custom_call.1} parent=1 // pred_check
      _
    $region19: #{tpu_custom_call.1} parent=1 // pred_check_branch
      %49 = sbr.rel (0) target = $region21
    $region20: #{tpu_custom_call.1} parent=1 // pred_region
      %50 = dma.done [#allocation6], 2432
    $region21: #{tpu_custom_call.1} parent=1 // pred_fallthru
      _
    // Predicated region
    $region22: #{tpu_custom_call.1} parent=1 // pred_check
      _
    $region23: #{tpu_custom_call.1} parent=1 // pred_check_branch
      %52 = sbr.rel (0) target = $region25
    $region24: #{tpu_custom_call.1} parent=1 // pred_region
      %53 = dma.done [#allocation6], 128
    $region25: #{tpu_custom_call.1} parent=1 // pred_fallthru
      _
    %v54 = vld [vmem:[#allocation2] sm:$0xff]
    %v55 = vld [vmem:[#allocation2 + $0x8] sm:$0xff]
    %v56 = vld [vmem:[#allocation2 + $0x10] sm:$0xff]
    %v57 = vld [vmem:[#allocation2 + $0x18] sm:$0xff]
    %v58 = vld [vmem:[#allocation2 + $0x20] sm:$0xff]
    %v59 = vld [vmem:[#allocation2 + $0x28] sm:$0xff]
    %v60 = vld [vmem:[#allocation2 + $0x30] sm:$0xff]
    %v61 = vld [vmem:[#allocation2 + $0x38] sm:$0xff]
    %v62 = vld [vmem:[#allocation5] sm:$0xff]
    %v63 = vld [vmem:[#allocation5 + $0x8] sm:$0xff]
    %v64 = vld [vmem:[#allocation5 + $0x10] sm:$0xff]
    %v65 = vld [vmem:[#allocation5 + $0x18] sm:$0xff]
    %v66 = vld [vmem:[#allocation5 + $0x20] sm:$0xff]
    %v67 = vld [vmem:[#allocation5 + $0x28] sm:$0xff]
    %v68 = vld [vmem:[#allocation5 + $0x30] sm:$0xff]
    %v69 = vld [vmem:[#allocation5 + $0x38] sm:$0xff]
    %v70 = vld [vmem:[#allocation5 + $0x40] sm:$0xff]
    %v71 = vld [vmem:[#allocation5 + $0x48] sm:$0xff]
    %v72 = vld [vmem:[#allocation5 + $0x50] sm:$0xff]
    %v73 = vld [vmem:[#allocation5 + $0x58] sm:$0xff]
    %v74 = vld [vmem:[#allocation5 + $0x60] sm:$0xff]
    %v75 = vld [vmem:[#allocation5 + $0x68] sm:$0xff]
    %v76 = vld [vmem:[#allocation5 + $0x70] sm:$0xff]
    %v77 = vld [vmem:[#allocation5 + $0x78] sm:$0xff]
    %v78 = vld [vmem:[#allocation5 + $0x80] sm:$0xff]
    %v79 = vld [vmem:[#allocation5 + $0x88] sm:$0xff]
    %v80 = vld [vmem:[#allocation5 + $0x90] sm:$0x7]
    %v81 = vld [vmem:[#allocation7] sm:$0x1]
    %v82 = vlaneseq
    %v83 = vshrl.u32 %v82, 7
    %v84 = vsub.s32 0, %v83
    %v85 = vrot.slane %v81, %v84
    %vm86 = vcmask 154624
    %v88 = vsel %vm86, %v55, 0
    %v91 = vsel %vm86, %v57, 0
    %v94 = vsel %vm86, %v59, 0
    %v97 = vsel %vm86, %v61, 0
    %vm99 = vcmask 1042432
    %v101 = vsel %vm99, %v80, 0
    %103 = vmatprep.subr.mxu0 0.0
    %104 = vmatpush1.msra.mxu0 %v62
    %105 = vmatprep.subr.mxu0 0.0
    %106 = vmatpush1.msra.mxu0 %v63
    %107 = vmatprep.subr.mxu0 0.0
    %108 = vmatpush1.msra.mxu0 %v64
    %109 = vmatprep.subr.mxu0 0.0
    %110 = vmatpush1.msra.mxu0 %v65
    %111 = vmatprep.subr.mxu0 0.0
    %112 = vmatpush1.msra.mxu0 %v66
    %113 = vmatprep.subr.mxu0 0.0
    %114 = vmatpush1.msra.mxu0 %v67
    %115 = vmatprep.subr.mxu0 0.0
    %116 = vmatpush1.msra.mxu0 %v68
    %117 = vmatprep.subr.mxu0 0.0
    %118 = vmatpush1.msra.mxu0 %v69
    %119 = vmatprep.subr.mxu0 0.0
    %120 = vmatpush1.msra.mxu0 %v70
    %121 = vmatprep.subr.mxu0 0.0
    %122 = vmatpush1.msra.mxu0 %v71
    %123 = vmatprep.subr.mxu0 0.0
    %124 = vmatpush1.msra.mxu0 %v72
    %125 = vmatprep.subr.mxu0 0.0
    %126 = vmatpush1.msra.mxu0 %v73
    %127 = vmatprep.subr.mxu0 0.0
    %128 = vmatpush1.msra.mxu0 %v74
    %129 = vmatprep.subr.mxu0 0.0
    %130 = vmatpush1.msra.mxu0 %v75
    %131 = vmatprep.subr.mxu0 0.0
    %132 = vmatpush1.msra.mxu0 %v76
    %133 = vmatprep.subr.mxu0 0.0
    %134 = vmatpush1.msra.mxu0 %v77
    %135 = vmatprep.subr.mxu0 0.0
    %136 = vmatpush1.msra.mxu0 %v78
    %137 = vmatprep.subr.mxu0 0.0
    %138 = vmatpush1.msra.mxu0 %v79
    %139 = vmatprep.subr.mxu0 0.0
    %140 = vmatpush1.msra.mxu0 %v101
    %141 = vmatprep.subr.mxu0 0.0
    %142 = vmatpush1.msra.mxu0 0.0
    %143 = vmatprep.subr.mxu0 0.0
    %144 = vmatpush1.msra.mxu0 0.0
    %145 = vmatprep.subr.mxu0 0.0
    %146 = vmatpush1.msra.mxu0 0.0
    %147 = vmatprep.subr.mxu0 0.0
    %148 = vmatpush1.msra.mxu0 0.0
    %149 = vmatprep.subr.mxu0 0.0
    %150 = vmatpush1.msra.mxu0 0.0
    %151 = vmatprep.subr.mxu0 0.0
    %152 = vmatpush1.msra.mxu0 0.0
    %153 = vmatprep.subr.mxu0 0.0
    %154 = vmatpush1.msra.mxu0 0.0
    %155 = vmatprep.subr.mxu0 0.0
    %156 = vmatpush1.msra.mxu0 0.0
    %157 = vmatprep.subr.mxu0 0.0
    %158 = vmatpush1.msra.mxu0 0.0
    %159 = vmatprep.subr.mxu0 0.0
    %160 = vmatpush1.msra.mxu0 0.0
    %161 = vmatprep.subr.mxu0 0.0
    %162 = vmatpush1.msra.mxu0 0.0
    %163 = vmatprep.subr.mxu0 0.0
    %164 = vmatpush1.msra.mxu0 0.0
    %165 = vmatprep.subr.mxu0 0.0
    %166 = vmatpush1.msra.mxu0 0.0
    %167 = vmatprep.mubr.f32.mxu0 %v88
    %168 = vmatmul.mubr.f32.gmra.mrb[0].mxu0 %v54
    %v169 = vpop.f32.mrb[0].mxu0
    %v170 = vadd.f32 %v85, %v169
    %v171 = vpop.f32.mrb[0].mxu0
    %172 = vmatprep.mubr.f32.mxu0 %v91
    %173 = vmatmul.mubr.f32.gmra.mrb[0].mxu0 %v56
    %v174 = vpop.f32.mrb[0].mxu0
    %v175 = vadd.f32 %v85, %v174
    %v176 = vpop.f32.mrb[0].mxu0
    %177 = vmatprep.mubr.f32.mxu0 %v94
    %178 = vmatmul.mubr.f32.gmra.mrb[0].mxu0 %v58
    %v179 = vpop.f32.mrb[0].mxu0
    %v180 = vadd.f32 %v85, %v179
    %v181 = vpop.f32.mrb[0].mxu0
    %182 = vmatprep.mubr.f32.mxu0 %v97
    %183 = vmatmul.mubr.f32.gmra.mrb[0].mxu0 %v60
    %v184 = vpop.f32.mrb[0].mxu0
    %v185 = vadd.f32 %v85, %v184
    %v186 = vpop.f32.mrb[0].mxu0
    %187 = vdwg.mxu0
    %v188 = vld [vmem:[#allocation7 + $0x3] sm:$0x1]
    %v189 = vlaneseq
    %v190 = vshrl.u32 %v189, 7
    %v191 = vsub.s32 0, %v190
    %v192 = vrot.slane %v188, %v191
    %v193 = vmul.f32 %v170, %v192
    %v194 = vmul.f32 %v175, %v192
    %v195 = vmul.f32 %v180, %v192
    %v196 = vmul.f32 %v185, %v192
    %197 = vadd.xlane.f32.xlu0 %v193
    %v198 = vpop.xlane.xlu0 %197
    %199 = vadd.xlane.f32.xlu0 %v194
    %v200 = vpop.xlane.xlu0 %199
    %201 = vadd.xlane.f32.xlu0 %v195
    %v202 = vpop.xlane.xlu0 %201
    %203 = vadd.xlane.f32.xlu0 %v196
    %v204 = vpop.xlane.xlu0 %203
    %v205 = vmul.f32 %v198, 0.015625
    %v206 = vmul.f32 %v200, 0.015625
    %v207 = vmul.f32 %v202, 0.015625
    %v208 = vmul.f32 %v204, 0.015625
    %v209 = vsub.f32 %v170, %v205
    %v210 = vsub.f32 %v175, %v206
    %v211 = vsub.f32 %v180, %v207
    %v212 = vsub.f32 %v185, %v208
    %v213 = vmul.f32 %v209, %v192
    %v214 = vmul.f32 %v210, %v192
    %v215 = vmul.f32 %v211, %v192
    %v216 = vmul.f32 %v212, %v192
    %v217 = vmul.f32 %v213, %v213
    %v218 = vmul.f32 %v214, %v214
    %v219 = vmul.f32 %v215, %v215
    %v220 = vmul.f32 %v216, %v216
    %221 = vadd.xlane.f32.xlu0 %v217
    %v222 = vpop.xlane.xlu0 %221
    %223 = vadd.xlane.f32.xlu0 %v218
    %v224 = vpop.xlane.xlu0 %223
    %225 = vadd.xlane.f32.xlu0 %v219
    %v226 = vpop.xlane.xlu0 %225
    %227 = vadd.xlane.f32.xlu0 %v220
    %v228 = vpop.xlane.xlu0 %227
    %v229 = vmul.f32 %v222, 0.015625
    %v230 = vmul.f32 %v224, 0.015625
    %v231 = vmul.f32 %v226, 0.015625
    %v232 = vmul.f32 %v228, 0.015625
    %v233 = vadd.f32 %v229, 1e-05
    %v234 = vadd.f32 %v230, 1e-05
    %v235 = vadd.f32 %v231, 1e-05
    %v236 = vadd.f32 %v232, 1e-05
    %v237 = vrsqrt.pop %v233
    %v238 = vrsqrt.pop %v234
    %v239 = vrsqrt.pop %v235
    %v240 = vrsqrt.pop %v236
    %v241 = vmul.f32 %v213, %v237
    %v242 = vmul.f32 %v214, %v238
    %v243 = vmul.f32 %v215, %v239
    %v244 = vmul.f32 %v216, %v240
    %v245 = vld [vmem:[#allocation7 + $0x1] sm:$0x1]
    %v246 = vlaneseq
    %v247 = vshrl.u32 %v246, 7
    %v248 = vsub.s32 0, %v247
    %v249 = vrot.slane %v245, %v248
    %v250 = vmul.f32 %v241, %v249
    %v251 = vmul.f32 %v242, %v249
    %v252 = vmul.f32 %v243, %v249
    %v253 = vmul.f32 %v244, %v249
    %v254 = vld [vmem:[#allocation7 + $0x2] sm:$0x1]
    %v255 = vlaneseq
    %v256 = vshrl.u32 %v255, 7
    %v257 = vsub.s32 0, %v256
    %v258 = vrot.slane %v254, %v257
    %v259 = vadd.f32 %v250, %v258
    %v260 = vadd.f32 %v251, %v258
    %v261 = vadd.f32 %v252, %v258
    %v262 = vadd.f32 %v253, %v258
    %263 = vst [vmem:[#allocation8] sm:$0xff] %v259
    %264 = vst [vmem:[#allocation8 + $0x8] sm:$0xff] %v260
    %265 = vst [vmem:[#allocation8 + $0x10] sm:$0xff] %v261
    %266 = vst [vmem:[#allocation8 + $0x18] sm:$0xff] %v262
    // Predicated region
    $region26: #{tpu_custom_call.1} parent=1 // pred_check
      _
    $region27: #{tpu_custom_call.1} parent=1 // pred_check_branch
      %268 = sbr.rel (0) target = $region29
    $region28: #{tpu_custom_call.1} parent=1 // pred_region
      %s270 = ssub.s32 512, 512
      %271 = vsyncadd [#allocation4], %s270
      %s272 = sshll.u32 [#allocation8], 4
      %s273 = int_to_ptr.vmem [resolvable:$true] %s272
      %278 = dma.vmem_to_hbm [thread:$0]  %s273, 512, %s3, [#allocation4], 128, 128, 8
    $region29: #{tpu_custom_call.1} parent=1 // pred_fallthru
      _
    // Predicated region
    $region30: #{tpu_custom_call.1} parent=1 // pred_check
      _
    $region31: #{tpu_custom_call.1} parent=1 // pred_check_branch
      %280 = sbr.rel (0) target = $region33
    $region32: #{tpu_custom_call.1} parent=1 // pred_region
      %281 = dma.done [#allocation4], 512
    $region33: #{tpu_custom_call.1} parent=1 // pred_fallthru
      _
    %282 = vsyncpa [#allocation3], 1
    %283 = vsyncpa [#allocation6], 1
    %284 = vsyncpa [#allocation4], 1

</llo_original>
